<compile_context>
chip_gen: v6e
topology: v6e:2x2x1
jax: 0.10.0
libtpu: 0.0.40
codegen_flags: <defaults>
</compile_context>

<pallas_src>
import jax
import jax.numpy as jnp
from jax.experimental import pallas as pl
from jax.experimental.pallas import tpu as pltpu


LANES = 128
_TARGET_TILE_BYTES = 4 * 1024 * 1024   # per-buffer tile target (fits every TPU gen)
_VMEM_LIMIT_BYTES = 48 * 1024 * 1024   # 3 arrays x 2 bufs x 4 MiB = 24 MiB << 48 MiB


def _mul_kernel(x_ref, w_ref, o_ref):
    # Pure elementwise VPU multiply on the current VMEM tile.
    o_ref[...] = (x_ref[...] * w_ref[...]).astype(o_ref.dtype)


def _mul_scalar_kernel(x_ref, w_ref, o_ref):
    # w_ref is a (1,) float32 array in SMEM: one cheap scalar load, broadcast
    # across the whole tile by the VPU.  The weight never touches HBM at x-size.
    o_ref[...] = (x_ref[...] * w_ref[0]).astype(o_ref.dtype)


def _slab(total):
    """Pick a lane-dense 2D slab (rows, width, padded_total) for `total` elems.

    Prefer a wide (multiple-of-128) last dim so output stores are unmasked
    full-width vst and DMAs are large/contiguous.
    """
    for width in (4096, 2048, 1024, 512, 256, 128):
        if total % width == 0:
            return total // width, width, total
    # Ragged element count: pad once to a (8k, 1024)-friendly size.
    width = 8 * LANES
    padded = pl.cdiv(total, width) * width
    return padded // width, width, padded


def _block_rows(rows, width, itemsize):
    """Largest packed-sublane-aligned row count whose tile ~hits the target size."""
    sub = max(8, 32 // max(1, itemsize))          # 8 for f32, 16 for bf16, 32 for int8
    target = max(1, _TARGET_TILE_BYTES // (width * itemsize))
    if target >= rows:
        return rows                                # full extent along rows is always legal
    return max(sub, (target // sub) * sub)


def mul_pallas(x: jax.Array, weight) -> jax.Array:
    """Computes x * weight (PyTorch-style broadcasting) with a Pallas TPU kernel."""
    weight = jnp.asarray(weight)
    out_dtype = jnp.result_type(x.dtype, weight.dtype)
    out_shape = jnp.broadcast_shapes(x.shape, weight.shape)

    if x.shape != out_shape:
        x = jnp.broadcast_to(x, out_shape)
    total = 1
    for d in out_shape:
        total *= d

    rows, width, padded = _slab(total)
    itemsize = jnp.dtype(out_dtype).itemsize
    block_rows = _block_rows(rows, width, itemsize)
    grid = (pl.cdiv(rows, block_rows),)

    def _to_slab(arr):
        flat = jnp.ravel(arr.astype(out_dtype))
        if padded != total:
            flat = jnp.pad(flat, (0, padded - total))   # only on the ragged path
        return flat.reshape(rows, width)

    x2d = _to_slab(x)

    block_spec = pl.BlockSpec((block_rows, width), lambda i: (i, 0))
    compiler_params = pltpu.CompilerParams(
        dimension_semantics=("parallel",),
        vmem_limit_bytes=_VMEM_LIMIT_BYTES,
    )
    out_struct = jax.ShapeDtypeStruct((rows, width), out_dtype)

    if weight.size == 1:
        # Scalar weight: keep it out of HBM entirely -> a single SMEM scalar.
        w_smem = weight.astype(jnp.float32).reshape(1)
        out2d = pl.pallas_call(
            _mul_scalar_kernel,
            out_shape=out_struct,
            grid_spec=pltpu.PrefetchScalarGridSpec(
                num_scalar_prefetch=0,
                grid=grid,
                in_specs=[
                    block_spec,
                    pl.BlockSpec(memory_space=pltpu.MemorySpace.SMEM),
                ],
                out_specs=block_spec,
            ),
            compiler_params=compiler_params,
        )(x2d, w_smem)
    else:
        if weight.shape != out_shape:
            # TODO(synk): specialized per-channel broadcast path that keeps the
            # small weight resident in VMEM instead of materializing it in HBM.
            weight = jnp.broadcast_to(weight, out_shape)
        w2d = _to_slab(weight)
        out2d = pl.pallas_call(
            _mul_kernel,
            out_shape=out_struct,
            grid_spec=pltpu.PrefetchScalarGridSpec(
                num_scalar_prefetch=0,
                grid=grid,
                in_specs=[block_spec, block_spec],
                out_specs=block_spec,
            ),
            compiler_params=compiler_params,
        )(x2d, w2d)

    if padded != total:
        return out2d.reshape(-1)[:total].reshape(out_shape)
    return out2d.reshape(out_shape)   # contiguous reshape: free


if __name__ == "__main__":
    key = jax.random.PRNGKey(0)
    kx, kw = jax.random.split(key)

    # NCHW input; the module stores whatever weight it is given — use the
    # same-shape case as the primary test.
    x = jax.random.normal(kx, (2, 4, 16, 16), dtype=jnp.float32)
    weight = jax.random.normal(kw, (2, 4, 16, 16), dtype=jnp.float32)

    out = mul_pallas(x, weight)
    jax.block_until_ready(out)
    ref = x * weight
    assert out.shape == ref.shape and out.dtype == ref.dtype
    assert jnp.allclose(out, ref, atol=1e-6, rtol=1e-6)

    # Scalar-weight variant: broadcast weight stays in SMEM, never materialized.
    w_scalar = jnp.float32(1.5)
    out_s = mul_pallas(x, w_scalar)
    jax.block_until_ready(out_s)
    assert jnp.allclose(out_s, x * w_scalar, atol=1e-6, rtol=1e-6)

    print("KERNEL_OK")
</pallas_src>

<mosaic_0001>
module attributes {stable_mosaic.version = 11 : i64} {
  func.func @_mul_kernel(%arg0: i32, %arg1: memref<1x2048xf32, #tpu.memory_space<vmem>>, %arg2: memref<1x2048xf32, #tpu.memory_space<vmem>>, %arg3: memref<1x2048xf32, #tpu.memory_space<vmem>>) attributes {dimension_semantics = [#tpu.dimension_semantics<parallel>], iteration_bounds = array<i64: 1>, scalar_prefetch = 0 : i64, scratch_operands = 0 : i64, tpu.core_type = #tpu.core_type<tc>, window_params = [{transform_indices = @transform_0, window_bounds = array<i64: 1, 2048>}, {transform_indices = @transform_1, window_bounds = array<i64: 1, 2048>}, {transform_indices = @transform_2, window_bounds = array<i64: 1, 2048>}]} {
    %c0 = arith.constant 0 : index
    %c0_0 = arith.constant 0 : index
    %0 = vector.load %arg1[%c0, %c0_0] : memref<1x2048xf32, #tpu.memory_space<vmem>>, vector<1x2048xf32>
    %c0_1 = arith.constant 0 : index
    %c0_2 = arith.constant 0 : index
    %1 = vector.load %arg2[%c0_1, %c0_2] : memref<1x2048xf32, #tpu.memory_space<vmem>>, vector<1x2048xf32>
    %2 = arith.mulf %0, %1 : vector<1x2048xf32>
    %c0_3 = arith.constant 0 : index
    %c0_4 = arith.constant 0 : index
    %3 = vector.load %arg3[%c0_3, %c0_4] : memref<1x2048xf32, #tpu.memory_space<vmem>>, vector<1x2048xf32>
    tpu.vector_store %arg3[%c0_3, %c0_4], %2 {strides = array<i32>} : memref<1x2048xf32, #tpu.memory_space<vmem>>, vector<1x2048xf32>,
    return
  }
  func.func @transform_0(%arg0: i32) -> (i32, i32) {
    %c0_i32 = arith.constant 0 : i32
    %c0_i32_0 = arith.constant 0 : i32
    return %arg0, %c0_i32 : i32, i32
  }
  func.func @transform_1(%arg0: i32) -> (i32, i32) {
    %c0_i32 = arith.constant 0 : i32
    %c0_i32_0 = arith.constant 0 : i32
    return %arg0, %c0_i32 : i32, i32
  }
  func.func @transform_2(%arg0: i32) -> (i32, i32) {
    %c0_i32 = arith.constant 0 : i32
    %c0_i32_0 = arith.constant 0 : i32
    return %arg0, %c0_i32 : i32, i32
  }
}

</mosaic_0001>

<llo_original>
// kernel: tpu_custom_call.1
$region0: #{tpu_custom_call.1}
  #allocation0 [shape = 'u32[]', space=smem, size = 0x4, offset = 0x4, fixed_abs, tag = 'smem constant byte address 0x4 - core index']
  #allocation1 [shape = 'u32[144,128]{1,0:T(1,128)}', space=vmem, size = 0x12000, scoped, tag = 'internal scratch']
  %s0 = inlined_call_operand.hbm [shape: f32[1,2048], index: 0, kind: input, shape index: {}]
  %s1 = inlined_call_operand.hbm [shape: f32[1,2048], index: 1, kind: input, shape index: {}]
  %s2 = inlined_call_operand.hbm [shape: f32[1,2048], index: 2, kind: output, shape index: {}]
  %s3 = sld [smem:[#allocation0]]
  $region26: #{tpu_custom_call.1} parent=0
    _
  %s5 = ssub.s32 1, %s3
  %s6 = scalar_select 0, %s5, %s3
  $region1: #{tpu_custom_call.1} parent=0
    #allocation2 [shape = 'u8[8192]{0}', space=vmem, size = 0x2000, scoped, tag = 'input window, operand 0, single buffered']
    #allocation3 [shape = 's32[1]{0}', space=sflag, size = 0x4, scoped, tag = 'scoped memory for tpu_custom_call.1']
    #allocation4 [shape = 's32[1]{0}', space=sflag, size = 0x4, scoped, tag = 'scoped memory for tpu_custom_call.1']
    #allocation5 [shape = 'u8[8192]{0}', space=vmem, size = 0x2000, scoped, tag = 'input window, operand 1, single buffered']
    #allocation6 [shape = 's32[1]{0}', space=sflag, size = 0x4, scoped, tag = 'scoped memory for tpu_custom_call.1']
    #allocation7 [shape = 'u8[8192]{0}', space=vmem, size = 0x2000, scoped, tag = 'output window, operand 0, single buffered']
    %7 = vsyncpa [#allocation3], 0
    %8 = vsyncpa [#allocation6], 0
    %9 = vsyncpa [#allocation4], 0
    // Predicated region
    $region2: #{tpu_custom_call.1} parent=1 // pred_check
      _
    $region3: #{tpu_custom_call.1} parent=1 // pred_check_branch
      %11 = sbr.rel (0) target = $region5
    $region4: #{tpu_custom_call.1} parent=1 // pred_region
      %s13 = ssub.s32 256, 256
      %14 = vsyncadd [#allocation3], %s13
      %s16 = sshll.u32 [#allocation2], 4
      %s17 = int_to_ptr.vmem [resolvable:$true] %s16
      %19 = dma.hbm_to_vmem [thread:$0]  %s0, 256, %s17, [#allocation3]
    $region5: #{tpu_custom_call.1} parent=1 // pred_fallthru
      _
    // Predicated region
    $region6: #{tpu_custom_call.1} parent=1 // pred_check
      _
    $region7: #{tpu_custom_call.1} parent=1 // pred_check_branch
      %21 = sbr.rel (0) target = $region9
    $region8: #{tpu_custom_call.1} parent=1 // pred_region
      %s23 = ssub.s32 256, 256
      %24 = vsyncadd [#allocation6], %s23
      %s26 = sshll.u32 [#allocation5], 4
      %s27 = int_to_ptr.vmem [resolvable:$true] %s26
      %29 = dma.hbm_to_vmem [thread:$0]  %s1, 256, %s27, [#allocation6]
    $region9: #{tpu_custom_call.1} parent=1 // pred_fallthru
      _
    // Predicated region
    $region10: #{tpu_custom_call.1} parent=1 // pred_check
      _
    $region11: #{tpu_custom_call.1} parent=1 // pred_check_branch
      %31 = sbr.rel (0) target = $region13
    $region12: #{tpu_custom_call.1} parent=1 // pred_region
      %32 = dma.done [#allocation3], 256
    $region13: #{tpu_custom_call.1} parent=1 // pred_fallthru
      _
    // Predicated region
    $region14: #{tpu_custom_call.1} parent=1 // pred_check
      _
    $region15: #{tpu_custom_call.1} parent=1 // pred_check_branch
      %34 = sbr.rel (0) target = $region17
    $region16: #{tpu_custom_call.1} parent=1 // pred_region
      %35 = dma.done [#allocation6], 256
    $region17: #{tpu_custom_call.1} parent=1 // pred_fallthru
      _
    %v36 = vld [vmem:[#allocation2] sm:$0xff]
    %v37 = vld [vmem:[#allocation2 + $0x8] sm:$0xff]
    %v38 = vld [vmem:[#allocation5] sm:$0xff]
    %v39 = vld [vmem:[#allocation5 + $0x8] sm:$0xff]
    %v40 = vmul.f32 %v36, %v38
    %v41 = vmul.f32 %v37, %v39
    %42 = vst [vmem:[#allocation7] sm:$0xff] %v40
    %43 = vst [vmem:[#allocation7 + $0x8] sm:$0xff] %v41
    // Predicated region
    $region18: #{tpu_custom_call.1} parent=1 // pred_check
      _
    $region19: #{tpu_custom_call.1} parent=1 // pred_check_branch
      %45 = sbr.rel (0) target = $region21
    $region20: #{tpu_custom_call.1} parent=1 // pred_region
      %s47 = ssub.s32 256, 256
      %48 = vsyncadd [#allocation4], %s47
      %s50 = sshll.u32 [#allocation7], 4
      %s51 = int_to_ptr.vmem [resolvable:$true] %s50
      %53 = dma.vmem_to_hbm [thread:$0]  %s51, 256, %s2, [#allocation4]
    $region21: #{tpu_custom_call.1} parent=1 // pred_fallthru
      _
    // Predicated region
    $region22: #{tpu_custom_call.1} parent=1 // pred_check
      _
    $region23: #{tpu_custom_call.1} parent=1 // pred_check_branch
      %55 = sbr.rel (0) target = $region25
    $region24: #{tpu_custom_call.1} parent=1 // pred_region
      %56 = dma.done [#allocation4], 256
    $region25: #{tpu_custom_call.1} parent=1 // pred_fallthru
      _
    %57 = vsyncpa [#allocation3], 1
    %58 = vsyncpa [#allocation6], 1
    %59 = vsyncpa [#allocation4], 1

</llo_original>
